<compile_context>
chip_gen: v7x
topology: tpu7x:2x2x1
jax: 0.10.0
libtpu: 0.0.40
codegen_flags: <defaults>
</compile_context>

<pallas_src>
import functools

import jax
import jax.numpy as jnp
from jax import lax
from jax.experimental import pallas as pl
from jax.experimental.pallas import tpu as pltpu


def _mlp_kernel(x_ref, w1_ref, b1_ref, wdw_ref, bdw_ref, w2_ref, b2_ref, o_ref,
                *, H, W, TH):
    """One (batch, row-band) step: fc1 -> dw3x3 -> ReLU -> fc2."""
    t = pl.program_id(1)                       # row-band index
    Ch = w1_ref.shape[1]
    rows = TH + 2                              # band rows incl. 1-row halo each side

    # ---- fc1: 1x1 conv + folded BN == matmul over channels (MXU, bf16 in / f32 acc)
    h = jnp.dot(x_ref[0, 0], w1_ref[...], preferred_element_type=jnp.float32)
    h = h + b1_ref[...]                        # (rows*W, Ch) f32
    h = h.reshape(rows, W, Ch)

    # Rows of the band that fall in the dwconv's zero padding (outside the image)
    # must be exactly zero (fc1 of a zero row would otherwise contribute its bias).
    row = lax.broadcasted_iota(jnp.int32, (rows, W, Ch), 0)
    p = t * TH + row                           # index into the H-padded image [0, H+2)
    h = jnp.where((p >= 1) & (p <= H), h, 0.0)

    # ---- depthwise 3x3, stride 1, pad 1 (VPU, f32).
    # W-direction shifts computed once (XLU roll + edge mask), reused for all
    # three row offsets.  pltpu.roll needs non-negative shifts, so the "-1"
    # rotation is expressed as a rotation by W-1.
    col = lax.broadcasted_iota(jnp.int32, (rows, W, Ch), 1)
    h_l = jnp.where(col == 0, 0.0, pltpu.roll(h, 1, axis=1))        # value from j-1
    h_r = jnp.where(col == W - 1, 0.0, pltpu.roll(h, W - 1, axis=1))  # value from j+1
    taps = (h_l, h, h_r)
    wdw = wdw_ref[...]                          # (3, 3, Ch)

    acc = taps[0][0:TH] * wdw[0, 0]             # init with first tap (no zeros bcast)
    for dj in (1, 2):
        acc = acc + taps[dj][0:TH] * wdw[0, dj]
    for di in (1, 2):
        for dj in (0, 1, 2):
            acc = acc + taps[dj][di:di + TH] * wdw[di, dj]
    acc = acc + bdw_ref[...]

    # ---- ReLU (drop=0.0 is identity)
    acc = jnp.maximum(acc, 0.0)

    # ---- fc2: 1x1 conv + folded BN (MXU, bf16 in / f32 acc)
    out = jnp.dot(acc.reshape(TH * W, Ch).astype(w2_ref.dtype), w2_ref[...],
                  preferred_element_type=jnp.float32) + b2_ref[...]
    o_ref[0] = out.astype(o_ref.dtype)


def _pick_block_rows(H, W, c_hidden, target_bytes=2 << 20):
    """Largest divisor TH of H whose f32 band working set stays ~< 2 MiB
    (keeps tiles well inside v7x's 64 MiB VMEM), with TH*W a multiple of 8."""
    cand = [th for th in range(1, H + 1)
            if H % th == 0 and ((th * W) % 8 == 0 or th == H)]
    fits = [th for th in cand if 6 * (th + 2) * W * c_hidden * 4 <= target_bytes]
    return max(fits) if fits else min(cand)


def mlp_pallas(x_nchw, params, *, block_rows=None):
    """x_nchw: (B, Cin, H, W) float32. Returns (B, Cout, H, W) float32."""
    w1, b1, wdw, bdw, w2, b2 = params          # BN already folded, all f32
    B, Cin, H, W = x_nchw.shape
    Ch = w1.shape[1]
    Cout = w2.shape[1]

    TH = block_rows or _pick_block_rows(H, W, Ch)
    assert H % TH == 0, "block_rows must divide H"
    NB = H // TH
    assert (TH * W) % 8 == 0 or NB == 1, "need TH*W multiple of 8 for tiling"
    rows = TH + 2

    # Layout: NHWC, zero-pad H by 1 (dwconv padding), build overlapping row
    # bands with a 1-row halo.  In a NHWC-native pipeline the transpose would
    # disappear and only the cheap halo gather would remain.
    x_nhwc = jnp.transpose(x_nchw, (0, 2, 3, 1))                    # (B, H, W, Cin)
    x_pad = jnp.pad(x_nhwc, ((0, 0), (1, 1), (0, 0), (0, 0)))       # (B, H+2, W, Cin)
    x_bands = jnp.stack([x_pad[:, t * TH:t * TH + rows] for t in range(NB)],
                        axis=1)                                     # (B, NB, rows, W, Cin)
    x_bands = x_bands.reshape(B, NB, rows * W, Cin).astype(jnp.bfloat16)

    # BN fold stays in f32 (make_params); only cast the matmul weights here.
    w1_bf = w1.astype(jnp.bfloat16)
    w2_bf = w2.astype(jnp.bfloat16)
    b1_ = b1.reshape(1, Ch)
    bdw_ = bdw.reshape(1, Ch)
    b2_ = b2.reshape(1, Cout)

    kernel = functools.partial(_mlp_kernel, H=H, W=W, TH=TH)

    flops = B * H * W * (2 * Cin * Ch + 18 * Ch + 2 * Ch * Cout)
    bytes_accessed = (x_bands.size * 2 + B * H * W * Cout * 4
                      + (w1.size + w2.size) * 2
                      + (b1.size + bdw.size + b2.size + wdw.size) * 4)

    out_flat = pl.pallas_call(
        kernel,
        out_shape=jax.ShapeDtypeStruct((B, H * W, Cout), x_nchw.dtype),
        grid_spec=pltpu.PrefetchScalarGridSpec(
            num_scalar_prefetch=0,
            grid=(B, NB),
            in_specs=[
                pl.BlockSpec((1, 1, rows * W, Cin), lambda b, t: (b, t, 0, 0)),
                pl.BlockSpec((Cin, Ch), lambda b, t: (0, 0)),
                pl.BlockSpec((1, Ch), lambda b, t: (0, 0)),
                pl.BlockSpec((3, 3, Ch), lambda b, t: (0, 0, 0)),
                pl.BlockSpec((1, Ch), lambda b, t: (0, 0)),
                pl.BlockSpec((Ch, Cout), lambda b, t: (0, 0)),
                pl.BlockSpec((1, Cout), lambda b, t: (0, 0)),
            ],
            out_specs=pl.BlockSpec((1, TH * W, Cout), lambda b, t: (b, t, 0)),
        ),
        compiler_params=pltpu.CompilerParams(
            dimension_semantics=("parallel", "parallel"),
            vmem_limit_bytes=32 * 1024 * 1024),
        cost_estimate=pl.CostEstimate(flops=flops, transcendentals=0,
                                      bytes_accessed=bytes_accessed),
    )(x_bands, w1_bf, b1_, wdw, bdw_, w2_bf, b2_)

    out_nhwc = out_flat.reshape(B, H, W, Cout)
    return jnp.transpose(out_nhwc, (0, 3, 1, 2))                    # back to NCHW


def make_params(key, in_features, hidden_features, out_features):
    """Deterministic synthetic parameters with BN folded (in f32) into the 1x1 convs."""
    k1, k2, k3, k4 = jax.random.split(key, 4)
    eps = 1e-5

    # fc1: Conv2d(in, hidden, 1, bias=False) + BN(gamma=1, beta=0, mean=0, var=1)
    w1_conv = jax.random.normal(k1, (hidden_features, in_features), jnp.float32) * 0.1
    scale1 = 1.0 / jnp.sqrt(1.0 + eps)                   # gamma / sqrt(var + eps)
    w1 = (w1_conv * scale1).T                            # (Cin, Ch)
    b1 = jnp.zeros((hidden_features,), jnp.float32)      # beta - mean*scale = 0

    # dwconv: Conv2d(hidden, hidden, 3, 1, 1, groups=hidden, bias=True)
    wdw_oihw = jax.random.normal(k2, (hidden_features, 1, 3, 3), jnp.float32) * 0.1
    wdw = jnp.transpose(wdw_oihw[:, 0, :, :], (1, 2, 0))  # (3, 3, Ch)
    bdw = jax.random.normal(k3, (hidden_features,), jnp.float32) * 0.1

    # fc2: Conv2d(hidden, out, 1, bias=False) + BN
    w2_conv = jax.random.normal(k4, (out_features, hidden_features), jnp.float32) * 0.1
    scale2 = 1.0 / jnp.sqrt(1.0 + eps)
    w2 = (w2_conv * scale2).T                            # (Ch, Cout)
    b2 = jnp.zeros((out_features,), jnp.float32)

    return (w1, b1, wdw, bdw, w2, b2), (w1_conv, wdw_oihw, bdw, w2_conv)


def mlp_reference(x_nchw, raw_params):
    """Pure-JAX NCHW reference mirroring the PyTorch forward (eval mode)."""
    w1_conv, wdw_oihw, bdw, w2_conv = raw_params
    eps = 1e-5
    scale = 1.0 / jnp.sqrt(1.0 + eps)

    def conv1x1(x, w):  # w: (O, I)
        return lax.conv_general_dilated(
            x, w[:, :, None, None], (1, 1), "VALID",
            dimension_numbers=("NCHW", "OIHW", "NCHW"))

    h = conv1x1(x_nchw, w1_conv) * scale                  # fc1 conv + BN
    h = lax.conv_general_dilated(                         # depthwise 3x3
        h, wdw_oihw, (1, 1), ((1, 1), (1, 1)),
        dimension_numbers=("NCHW", "OIHW", "NCHW"),
        feature_group_count=h.shape[1]) + bdw[None, :, None, None]
    h = jnp.maximum(h, 0.0)                               # ReLU (drop=0.0)
    out = conv1x1(h, w2_conv) * scale                     # fc2 conv + BN
    return out


if __name__ == "__main__":
    B, Cin, H, W = 2, 4, 16, 16
    hidden, Cout = 8, 4

    key = jax.random.PRNGKey(0)
    kx, kp = jax.random.split(key)
    x = jax.random.normal(kx, (B, Cin, H, W), jnp.float32)

    params, raw_params = make_params(kp, Cin, hidden, Cout)

    # block_rows=8 -> 2 row bands per image -> grid (B, 2) = 4 pipelined steps.
    out = mlp_pallas(x, params, block_rows=8)
    out = jax.block_until_ready(out)

    ref = mlp_reference(x, raw_params)
    assert out.shape == (B, Cout, H, W)
    # bf16 MXU inputs -> looser tolerance than the pure-f32 version.
    assert jnp.allclose(out, ref, atol=5e-3, rtol=5e-2), (
        f"mismatch vs reference: max abs err {float(jnp.max(jnp.abs(out - ref)))}")

    print("KERNEL_OK")
</pallas_src>

<mosaic_0001>
module attributes {stable_mosaic.version = 11 : i64} {
  func.func @_mlp_kernel(%arg0: i32, %arg1: i32, %arg2: memref<1x1x160x4xbf16, #tpu.memory_space<vmem>>, %arg3: memref<4x8xbf16, #tpu.memory_space<vmem>>, %arg4: memref<1x8xf32, #tpu.memory_space<vmem>>, %arg5: memref<3x3x8xf32, #tpu.memory_space<vmem>>, %arg6: memref<1x8xf32, #tpu.memory_space<vmem>>, %arg7: memref<8x4xbf16, #tpu.memory_space<vmem>>, %arg8: memref<1x4xf32, #tpu.memory_space<vmem>>, %arg9: memref<1x128x4xf32, #tpu.memory_space<vmem>>) attributes {dimension_semantics = [#tpu.dimension_semantics<parallel>, #tpu.dimension_semantics<parallel>], iteration_bounds = array<i64: 2, 2>, scalar_prefetch = 0 : i64, scratch_operands = 0 : i64, tpu.core_type = #tpu.core_type<tc>, window_params = [{transform_indices = @transform_0, window_bounds = array<i64: 1, 1, 160, 4>}, {pipeline_mode = #tpu.pipeline_mode<synchronous>, transform_indices = @transform_1, window_bounds = array<i64: 4, 8>}, {pipeline_mode = #tpu.pipeline_mode<synchronous>, transform_indices = @transform_2, window_bounds = array<i64: 1, 8>}, {pipeline_mode = #tpu.pipeline_mode<synchronous>, transform_indices = @transform_3, window_bounds = array<i64: 3, 3, 8>}, {pipeline_mode = #tpu.pipeline_mode<synchronous>, transform_indices = @transform_4, window_bounds = array<i64: 1, 8>}, {pipeline_mode = #tpu.pipeline_mode<synchronous>, transform_indices = @transform_5, window_bounds = array<i64: 8, 4>}, {pipeline_mode = #tpu.pipeline_mode<synchronous>, transform_indices = @transform_6, window_bounds = array<i64: 1, 4>}, {transform_indices = @transform_7, window_bounds = array<i64: 1, 128, 4>}]} {
    %c0 = arith.constant 0 : index
    %c0_0 = arith.constant 0 : index
    %c0_1 = arith.constant 0 : index
    %c0_2 = arith.constant 0 : index
    %0 = vector.load %arg2[%c0, %c0_0, %c0_1, %c0_2] : memref<1x1x160x4xbf16, #tpu.memory_space<vmem>>, vector<1x1x160x4xbf16>
    %1 = vector.shape_cast %0 : vector<1x1x160x4xbf16> to vector<160x4xbf16>
    %c0_3 = arith.constant 0 : index
    %c0_4 = arith.constant 0 : index
    %2 = vector.load %arg3[%c0_3, %c0_4] : memref<4x8xbf16, #tpu.memory_space<vmem>>, vector<4x8xbf16>
    %cst = arith.constant dense<0.000000e+00> : vector<160x8xf32>
    %3 = tpu.matmul %1, %2, %cst {dimension_numbers = #tpu.dot_dimension_numbers<[1], [0], [0], [1], [0, 0, 1, 1], [], []>} : vector<160x4xbf16>, vector<4x8xbf16>, vector<160x8xf32> -> vector<160x8xf32>
    %c0_5 = arith.constant 0 : index
    %c0_6 = arith.constant 0 : index
    %4 = vector.load %arg4[%c0_5, %c0_6] : memref<1x8xf32, #tpu.memory_space<vmem>>, vector<1x8xf32>
    %5 = vector.broadcast %4 : vector<1x8xf32> to vector<160x8xf32>
    %6 = arith.addf %3, %5 : vector<160x8xf32>
    %7 = vector.shape_cast %6 : vector<160x8xf32> to vector<10x16x8xf32>
    %8 = tpu.iota {dimensions = array<i32: 0>} : vector<10x16x8xi32>
    %c8_i32 = arith.constant 8 : i32
    %9 = arith.muli %arg1, %c8_i32 : i32
    %10 = vector.broadcast %9 : i32 to vector<10x16x8xi32>
    %11 = arith.addi %10, %8 : vector<10x16x8xi32>
    %c1_i32 = arith.constant 1 : i32
    %12 = vector.broadcast %c1_i32 : i32 to vector<10x16x8xi32>
    %13 = arith.cmpi sge, %11, %12 : vector<10x16x8xi32>
    %c16_i32 = arith.constant 16 : i32
    %14 = vector.broadcast %c16_i32 : i32 to vector<10x16x8xi32>
    %15 = arith.cmpi sle, %11, %14 : vector<10x16x8xi32>
    %16 = arith.andi %13, %15 : vector<10x16x8xi1>
    %cst_7 = arith.constant 0.000000e+00 : f32
    %17 = vector.broadcast %cst_7 : f32 to vector<10x16x8xf32>
    %18 = arith.select %16, %7, %17 : vector<10x16x8xi1>, vector<10x16x8xf32>
    %19 = tpu.iota {dimensions = array<i32: 1>} : vector<10x16x8xi32>
    %c0_i32 = arith.constant 0 : i32
    %20 = vector.broadcast %c0_i32 : i32 to vector<10x16x8xi32>
    %21 = arith.cmpi eq, %19, %20 : vector<10x16x8xi32>
    %c1_i32_8 = arith.constant 1 : i32
    %22 = tpu.dynamic_rotate %18 by %c1_i32_8 dim 1 : vector<10x16x8xf32>, i32 -> vector<10x16x8xf32>
    %cst_9 = arith.constant 0.000000e+00 : f32
    %23 = vector.broadcast %cst_9 : f32 to vector<10x16x8xf32>
    %24 = arith.select %21, %23, %22 : vector<10x16x8xi1>, vector<10x16x8xf32>
    %c15_i32 = arith.constant 15 : i32
    %25 = vector.broadcast %c15_i32 : i32 to vector<10x16x8xi32>
    %26 = arith.cmpi eq, %19, %25 : vector<10x16x8xi32>
    %c15_i32_10 = arith.constant 15 : i32
    %27 = tpu.dynamic_rotate %18 by %c15_i32_10 dim 1 : vector<10x16x8xf32>, i32 -> vector<10x16x8xf32>
    %cst_11 = arith.constant 0.000000e+00 : f32
    %28 = vector.broadcast %cst_11 : f32 to vector<10x16x8xf32>
    %29 = arith.select %26, %28, %27 : vector<10x16x8xi1>, vector<10x16x8xf32>
    %c0_12 = arith.constant 0 : index
    %c0_13 = arith.constant 0 : index
    %c0_14 = arith.constant 0 : index
    %30 = vector.load %arg5[%c0_12, %c0_13, %c0_14] : memref<3x3x8xf32, #tpu.memory_space<vmem>>, vector<3x3x8xf32>
    %31 = vector.extract_strided_slice %24 {offsets = [0, 0, 0], sizes = [8, 16, 8], strides = [1, 1, 1]} : vector<10x16x8xf32> to vector<8x16x8xf32>
    %32 = vector.extract_strided_slice %30 {offsets = [0, 0, 0], sizes = [1, 1, 8], strides = [1, 1, 1]} : vector<3x3x8xf32> to vector<1x1x8xf32>
    %33 = vector.shape_cast %32 : vector<1x1x8xf32> to vector<8xf32>
    %34 = vector.shape_cast %33 : vector<8xf32> to vector<1x1x8xf32>
    %35 = vector.broadcast %34 : vector<1x1x8xf32> to vector<8x16x8xf32>
    %36 = arith.mulf %31, %35 : vector<8x16x8xf32>
    %37 = vector.extract_strided_slice %18 {offsets = [0, 0, 0], sizes = [8, 16, 8], strides = [1, 1, 1]} : vector<10x16x8xf32> to vector<8x16x8xf32>
    %38 = vector.extract_strided_slice %30 {offsets = [0, 1, 0], sizes = [1, 1, 8], strides = [1, 1, 1]} : vector<3x3x8xf32> to vector<1x1x8xf32>
    %39 = vector.shape_cast %38 : vector<1x1x8xf32> to vector<8xf32>
    %40 = vector.shape_cast %39 : vector<8xf32> to vector<1x1x8xf32>
    %41 = vector.broadcast %40 : vector<1x1x8xf32> to vector<8x16x8xf32>
    %42 = arith.mulf %37, %41 : vector<8x16x8xf32>
    %43 = arith.addf %36, %42 : vector<8x16x8xf32>
    %44 = vector.extract_strided_slice %29 {offsets = [0, 0, 0], sizes = [8, 16, 8], strides = [1, 1, 1]} : vector<10x16x8xf32> to vector<8x16x8xf32>
    %45 = vector.extract_strided_slice %30 {offsets = [0, 2, 0], sizes = [1, 1, 8], strides = [1, 1, 1]} : vector<3x3x8xf32> to vector<1x1x8xf32>
    %46 = vector.shape_cast %45 : vector<1x1x8xf32> to vector<8xf32>
    %47 = vector.shape_cast %46 : vector<8xf32> to vector<1x1x8xf32>
    %48 = vector.broadcast %47 : vector<1x1x8xf32> to vector<8x16x8xf32>
    %49 = arith.mulf %44, %48 : vector<8x16x8xf32>
    %50 = arith.addf %43, %49 : vector<8x16x8xf32>
    %51 = vector.extract_strided_slice %24 {offsets = [1, 0, 0], sizes = [8, 16, 8], strides = [1, 1, 1]} : vector<10x16x8xf32> to vector<8x16x8xf32>
    %52 = vector.extract_strided_slice %30 {offsets = [1, 0, 0], sizes = [1, 1, 8], strides = [1, 1, 1]} : vector<3x3x8xf32> to vector<1x1x8xf32>
    %53 = vector.shape_cast %52 : vector<1x1x8xf32> to vector<8xf32>
    %54 = vector.shape_cast %53 : vector<8xf32> to vector<1x1x8xf32>
    %55 = vector.broadcast %54 : vector<1x1x8xf32> to vector<8x16x8xf32>
    %56 = arith.mulf %51, %55 : vector<8x16x8xf32>
    %57 = arith.addf %50, %56 : vector<8x16x8xf32>
    %58 = vector.extract_strided_slice %18 {offsets = [1, 0, 0], sizes = [8, 16, 8], strides = [1, 1, 1]} : vector<10x16x8xf32> to vector<8x16x8xf32>
    %59 = vector.extract_strided_slice %30 {offsets = [1, 1, 0], sizes = [1, 1, 8], strides = [1, 1, 1]} : vector<3x3x8xf32> to vector<1x1x8xf32>
    %60 = vector.shape_cast %59 : vector<1x1x8xf32> to vector<8xf32>
    %61 = vector.shape_cast %60 : vector<8xf32> to vector<1x1x8xf32>
    %62 = vector.broadcast %61 : vector<1x1x8xf32> to vector<8x16x8xf32>
    %63 = arith.mulf %58, %62 : vector<8x16x8xf32>
    %64 = arith.addf %57, %63 : vector<8x16x8xf32>
    %65 = vector.extract_strided_slice %29 {offsets = [1, 0, 0], sizes = [8, 16, 8], strides = [1, 1, 1]} : vector<10x16x8xf32> to vector<8x16x8xf32>
    %66 = vector.extract_strided_slice %30 {offsets = [1, 2, 0], sizes = [1, 1, 8], strides = [1, 1, 1]} : vector<3x3x8xf32> to vector<1x1x8xf32>
    %67 = vector.shape_cast %66 : vector<1x1x8xf32> to vector<8xf32>
    %68 = vector.shape_cast %67 : vector<8xf32> to vector<1x1x8xf32>
    %69 = vector.broadcast %68 : vector<1x1x8xf32> to vector<8x16x8xf32>
    %70 = arith.mulf %65, %69 : vector<8x16x8xf32>
    %71 = arith.addf %64, %70 : vector<8x16x8xf32>
    %72 = vector.extract_strided_slice %24 {offsets = [2, 0, 0], sizes = [8, 16, 8], strides = [1, 1, 1]} : vector<10x16x8xf32> to vector<8x16x8xf32>
    %73 = vector.extract_strided_slice %30 {offsets = [2, 0, 0], sizes = [1, 1, 8], strides = [1, 1, 1]} : vector<3x3x8xf32> to vector<1x1x8xf32>
    %74 = vector.shape_cast %73 : vector<1x1x8xf32> to vector<8xf32>
    %75 = vector.shape_cast %74 : vector<8xf32> to vector<1x1x8xf32>
    %76 = vector.broadcast %75 : vector<1x1x8xf32> to vector<8x16x8xf32>
    %77 = arith.mulf %72, %76 : vector<8x16x8xf32>
    %78 = arith.addf %71, %77 : vector<8x16x8xf32>
    %79 = vector.extract_strided_slice %18 {offsets = [2, 0, 0], sizes = [8, 16, 8], strides = [1, 1, 1]} : vector<10x16x8xf32> to vector<8x16x8xf32>
    %80 = vector.extract_strided_slice %30 {offsets = [2, 1, 0], sizes = [1, 1, 8], strides = [1, 1, 1]} : vector<3x3x8xf32> to vector<1x1x8xf32>
    %81 = vector.shape_cast %80 : vector<1x1x8xf32> to vector<8xf32>
    %82 = vector.shape_cast %81 : vector<8xf32> to vector<1x1x8xf32>
    %83 = vector.broadcast %82 : vector<1x1x8xf32> to vector<8x16x8xf32>
    %84 = arith.mulf %79, %83 : vector<8x16x8xf32>
    %85 = arith.addf %78, %84 : vector<8x16x8xf32>
    %86 = vector.extract_strided_slice %29 {offsets = [2, 0, 0], sizes = [8, 16, 8], strides = [1, 1, 1]} : vector<10x16x8xf32> to vector<8x16x8xf32>
    %87 = vector.extract_strided_slice %30 {offsets = [2, 2, 0], sizes = [1, 1, 8], strides = [1, 1, 1]} : vector<3x3x8xf32> to vector<1x1x8xf32>
    %88 = vector.shape_cast %87 : vector<1x1x8xf32> to vector<8xf32>
    %89 = vector.shape_cast %88 : vector<8xf32> to vector<1x1x8xf32>
    %90 = vector.broadcast %89 : vector<1x1x8xf32> to vector<8x16x8xf32>
    %91 = arith.mulf %86, %90 : vector<8x16x8xf32>
    %92 = arith.addf %85, %91 : vector<8x16x8xf32>
    %c0_15 = arith.constant 0 : index
    %c0_16 = arith.constant 0 : index
    %93 = vector.load %arg6[%c0_15, %c0_16] : memref<1x8xf32, #tpu.memory_space<vmem>>, vector<1x8xf32>
    %94 = vector.shape_cast %93 : vector<1x8xf32> to vector<1x1x8xf32>
    %95 = vector.broadcast %94 : vector<1x1x8xf32> to vector<8x16x8xf32>
    %96 = arith.addf %92, %95 : vector<8x16x8xf32>
    %cst_17 = arith.constant 0.000000e+00 : f32
    %97 = vector.broadcast %cst_17 : f32 to vector<8x16x8xf32>
    %98 = arith.maximumf %96, %97 : vector<8x16x8xf32>
    %99 = vector.shape_cast %98 : vector<8x16x8xf32> to vector<128x8xf32>
    %100 = arith.truncf %99 : vector<128x8xf32> to vector<128x8xbf16>
    %c0_18 = arith.constant 0 : index
    %c0_19 = arith.constant 0 : index
    %101 = vector.load %arg7[%c0_18, %c0_19] : memref<8x4xbf16, #tpu.memory_space<vmem>>, vector<8x4xbf16>
    %cst_20 = arith.constant dense<0.000000e+00> : vector<128x4xf32>
    %102 = tpu.matmul %100, %101, %cst_20 {dimension_numbers = #tpu.dot_dimension_numbers<[1], [0], [0], [1], [0, 0, 1, 1], [], []>} : vector<128x8xbf16>, vector<8x4xbf16>, vector<128x4xf32> -> vector<128x4xf32>
    %c0_21 = arith.constant 0 : index
    %c0_22 = arith.constant 0 : index
    %103 = vector.load %arg8[%c0_21, %c0_22] : memref<1x4xf32, #tpu.memory_space<vmem>>, vector<1x4xf32>
    %104 = vector.broadcast %103 : vector<1x4xf32> to vector<128x4xf32>
    %105 = arith.addf %102, %104 : vector<128x4xf32>
    %c0_23 = arith.constant 0 : index
    %c0_24 = arith.constant 0 : index
    %c0_25 = arith.constant 0 : index
    %106 = vector.load %arg9[%c0_23, %c0_24, %c0_25] : memref<1x128x4xf32, #tpu.memory_space<vmem>>, vector<1x128x4xf32>
    %107 = vector.shape_cast %106 : vector<1x128x4xf32> to vector<128x4xf32>
    %108 = vector.shape_cast %105 : vector<128x4xf32> to vector<1x128x4xf32>
    tpu.vector_store %arg9[%c0_23, %c0_24, %c0_25], %108 {strides = array<i32>} : memref<1x128x4xf32, #tpu.memory_space<vmem>>, vector<1x128x4xf32>,
    return
  }
  func.func @transform_0(%arg0: i32, %arg1: i32) -> (i32, i32, i32, i32) {
    %c0_i32 = arith.constant 0 : i32
    %c0_i32_0 = arith.constant 0 : i32
    %c0_i32_1 = arith.constant 0 : i32
    return %arg0, %arg1, %c0_i32, %c0_i32_0 : i32, i32, i32, i32
  }
  func.func @transform_1(%arg0: i32, %arg1: i32) -> (i32, i32) {
    %c0_i32 = arith.constant 0 : i32
    %c0_i32_0 = arith.constant 0 : i32
    %c0_i32_1 = arith.constant 0 : i32
    return %c0_i32, %c0_i32_0 : i32, i32
  }
  func.func @transform_2(%arg0: i32, %arg1: i32) -> (i32, i32) {
    %c0_i32 = arith.constant 0 : i32
    %c0_i32_0 = arith.constant 0 : i32
    %c0_i32_1 = arith.constant 0 : i32
    return %c0_i32, %c0_i32_0 : i32, i32
  }
  func.func @transform_3(%arg0: i32, %arg1: i32) -> (i32, i32, i32) {
    %c0_i32 = arith.constant 0 : i32
    %c0_i32_0 = arith.constant 0 : i32
    %c0_i32_1 = arith.constant 0 : i32
    %c0_i32_2 = arith.constant 0 : i32
    return %c0_i32, %c0_i32_0, %c0_i32_1 : i32, i32, i32
  }
  func.func @transform_4(%arg0: i32, %arg1: i32) -> (i32, i32) {
    %c0_i32 = arith.constant 0 : i32
    %c0_i32_0 = arith.constant 0 : i32
    %c0_i32_1 = arith.constant 0 : i32
    return %c0_i32, %c0_i32_0 : i32, i32
  }
  func.func @transform_5(%arg0: i32, %arg1: i32) -> (i32, i32) {
    %c0_i32 = arith.constant 0 : i32
    %c0_i32_0 = arith.constant 0 : i32
    %c0_i32_1 = arith.constant 0 : i32
    return %c0_i32, %c0_i32_0 : i32, i32
  }
  func.func @transform_6(%arg0: i32, %arg1: i32) -> (i32, i32) {
    %c0_i32 = arith.constant 0 : i32
    %c0_i32_0 = arith.constant 0 : i32
    %c0_i32_1 = arith.constant 0 : i32
    return %c0_i32, %c0_i32_0 : i32, i32
  }
  func.func @transform_7(%arg0: i32, %arg1: i32) -> (i32, i32, i32) {
    %c0_i32 = arith.constant 0 : i32
    %c0_i32_0 = arith.constant 0 : i32
    return %arg0, %arg1, %c0_i32 : i32, i32, i32
  }
}

</mosaic_0001>

<llo_original>
// kernel: tpu_custom_call.1
$region0: #{tpu_custom_call.1}
  #allocation0 [shape = 'u32[]', space=smem, size = 0x4, offset = 0x4, fixed_abs, tag = 'smem constant byte address 0x4 - core index']
  #allocation1 [shape = 'u32[144,128]{1,0:T(1,128)}', space=vmem, size = 0x12000, scoped, tag = 'internal scratch']
  %s0 = inlined_call_operand.vmem [shape: bf16[2,2,160,4], index: 0, kind: input, shape index: {}]
  %s1 = inlined_call_operand.vmem [shape: bf16[4,8], index: 1, kind: input, shape index: {}]
  %s2 = inlined_call_operand.vmem [shape: f32[1,8], index: 2, kind: input, shape index: {}]
  %s3 = inlined_call_operand.vmem [shape: f32[3,3,8], index: 3, kind: input, shape index: {}]
  %s4 = inlined_call_operand.vmem [shape: f32[1,8], index: 4, kind: input, shape index: {}]
  %s5 = inlined_call_operand.vmem [shape: bf16[8,4], index: 5, kind: input, shape index: {}]
  %s6 = inlined_call_operand.vmem [shape: f32[1,4], index: 6, kind: input, shape index: {}]
  %s7 = inlined_call_operand.vmem [shape: f32[2,256,4], index: 7, kind: output, shape index: {}]
  %s8 = sld [smem:[#allocation0]]
  $region61: #{tpu_custom_call.1} parent=0
    _
  %s10 = ssub.s32 1, %s8
  %s11 = scalar_select 0, %s10, %s8
  loop: start=0, step=1, limit=6
  $region2: #{tpu_custom_call.1} parent=0 // loop_pre_header
    _
  $region3: #{tpu_custom_call.1} parent=0 // loop_header
    %s13 = sphi 0, %s17
    %p14 = scmp.ge.s32.totalorder %s13, 6
    %s20 = sphi 0, %s32
    %s21 = sphi 0, %s28
    %s22 = sphi 0, %s20
    %s23 = sphi 0, %s21
    %s24 = sphi 0, %s22
    %s25 = sphi 0, %s23
    %s37 = sphi 0, %s39
    %s40 = sphi 0, %s37
    %s41 = sphi 0, %s40
    %s57 = sphi 0, %s41
    %s61 = sphi 0, %s61
    %s63 = sphi 0, %s61
    %s64 = sphi 0, %s63
    %s78 = sphi 0, %s64
    %s82 = sphi 0, %s82
    %s84 = sphi 0, %s82
    %s85 = sphi 0, %s84
    %s99 = sphi 0, %s85
    %s103 = sphi 0, %s103
    %s105 = sphi 0, %s103
    %s106 = sphi 0, %s105
    %s120 = sphi 0, %s106
    %s124 = sphi 0, %s124
    %s126 = sphi 0, %s124
    %s127 = sphi 0, %s126
    %s141 = sphi 0, %s127
    %s145 = sphi 0, %s145
    %s147 = sphi 0, %s145
    %s148 = sphi 0, %s147
    %s162 = sphi 0, %s148
    %s166 = sphi 0, %s166
    %s168 = sphi 0, %s166
    %s169 = sphi 0, %s168
    %s183 = sphi 0, %s169
    %s191 = sphi 0, %s193
    %s194 = sphi 0, %s191
    %s195 = sphi 0, %s194
    %s211 = sphi 0, %s195
  $region4: #{tpu_custom_call.1} parent=0 // loop_header_branch
    %16 = sbr.rel (%p14) target = $region8
  $region5: #{tpu_custom_call.1} parent=0 // loop_body
    %s18 = ssub.s32 %s13, 1
    %s19 = ssub.s32 %s13, 2
    %s26 = sadd.s32 1, %s21
    %p27 = scmp.ge.s32.totalorder %s26, 2
    %s28 = scalar_select %p27, 0, %s26
    %s29 = sadd.s32 1, %s20
    %s30 = scalar_select %p27, %s29, %s20
    %p31 = scmp.ge.s32.totalorder %s30, 2
    %s32 = scalar_select %p31, 0, %s30
    %s33 = ssub.s32 %s20, %s32
    %s34 = ssub.s32 %s21, %s28
    %s35 = sor.u32 %s33, %s34
    %p36 = scmp.eq.s32.totalorder %s35, 0
    %s38 = sadd.s32 %s37, 1
    %s39 = scalar_select %p36, %s37, %s38
    %p42 = pneg %p36
    %p43 = scmp.eq.s32.totalorder %s13, 3
    %p44 = por %p42, %p43
    %p45 = scmp.ne.s32.totalorder %s37, %s40
    %p46 = scmp.eq.s32.totalorder %s13, 0
    %p47 = por %p45, %p46
    %p48 = scmp.ne.s32.totalorder %s37, %s40
    %p49 = scmp.eq.s32.totalorder %s18, 3
    %p50 = por %p48, %p49
    %p51 = scmp.ne.s32.totalorder %s40, %s41
    %p52 = scmp.eq.s32.totalorder %s18, 0
    %p53 = por %p51, %p52
    %p54 = scmp.ne.s32.totalorder %s40, %s41
    %p55 = scmp.eq.s32.totalorder %s19, 3
    %p56 = por %p54, %p55
    %p58 = scmp.ne.s32.totalorder %s41, %s57
    %p59 = scmp.eq.s32.totalorder %s19, 0
    %p60 = por %p58, %p59
    %s62 = sadd.s32 %s61, 1
    %p65 = scmp.eq.s32.totalorder %s13, 3
    %p66 = scmp.ne.s32.totalorder %s61, %s63
    %p67 = scmp.eq.s32.totalorder %s13, 0
    %p68 = por %p66, %p67
    %p69 = scmp.ne.s32.totalorder %s61, %s63
    %p70 = scmp.eq.s32.totalorder %s18, 3
    %p71 = por %p69, %p70
    %p72 = scmp.ne.s32.totalorder %s63, %s64
    %p73 = scmp.eq.s32.totalorder %s18, 0
    %p74 = por %p72, %p73
    %p75 = scmp.ne.s32.totalorder %s63, %s64
    %p76 = scmp.eq.s32.totalorder %s19, 3
    %p77 = por %p75, %p76
    %p79 = scmp.ne.s32.totalorder %s64, %s78
    %p80 = scmp.eq.s32.totalorder %s19, 0
    %p81 = por %p79, %p80
    %s83 = sadd.s32 %s82, 1
    %p86 = scmp.eq.s32.totalorder %s13, 3
    %p87 = scmp.ne.s32.totalorder %s82, %s84
    %p88 = scmp.eq.s32.totalorder %s13, 0
    %p89 = por %p87, %p88
    %p90 = scmp.ne.s32.totalorder %s82, %s84
    %p91 = scmp.eq.s32.totalorder %s18, 3
    %p92 = por %p90, %p91
    %p93 = scmp.ne.s32.totalorder %s84, %s85
    %p94 = scmp.eq.s32.totalorder %s18, 0
    %p95 = por %p93, %p94
    %p96 = scmp.ne.s32.totalorder %s84, %s85
    %p97 = scmp.eq.s32.totalorder %s19, 3
    %p98 = por %p96, %p97
    %p100 = scmp.ne.s32.totalorder %s85, %s99
    %p101 = scmp.eq.s32.totalorder %s19, 0
    %p102 = por %p100, %p101
    %s104 = sadd.s32 %s103, 1
    %p107 = scmp.eq.s32.totalorder %s13, 3
    %p108 = scmp.ne.s32.totalorder %s103, %s105
    %p109 = scmp.eq.s32.totalorder %s13, 0
    %p110 = por %p108, %p109
    %p111 = scmp.ne.s32.totalorder %s103, %s105
    %p112 = scmp.eq.s32.totalorder %s18, 3
    %p113 = por %p111, %p112
    %p114 = scmp.ne.s32.totalorder %s105, %s106
    %p115 = scmp.eq.s32.totalorder %s18, 0
    %p116 = por %p114, %p115
    %p117 = scmp.ne.s32.totalorder %s105, %s106
    %p118 = scmp.eq.s32.totalorder %s19, 3
    %p119 = por %p117, %p118
    %p121 = scmp.ne.s32.totalorder %s106, %s120
    %p122 = scmp.eq.s32.totalorder %s19, 0
    %p123 = por %p121, %p122
    %s125 = sadd.s32 %s124, 1
    %p128 = scmp.eq.s32.totalorder %s13, 3
    %p129 = scmp.ne.s32.totalorder %s124, %s126
    %p130 = scmp.eq.s32.totalorder %s13, 0
    %p131 = por %p129, %p130
    %p132 = scmp.ne.s32.totalorder %s124, %s126
    %p133 = scmp.eq.s32.totalorder %s18, 3
    %p134 = por %p132, %p133
    %p135 = scmp.ne.s32.totalorder %s126, %s127
    %p136 = scmp.eq.s32.totalorder %s18, 0
    %p137 = por %p135, %p136
    %p138 = scmp.ne.s32.totalorder %s126, %s127
    %p139 = scmp.eq.s32.totalorder %s19, 3
    %p140 = por %p138, %p139
    %p142 = scmp.ne.s32.totalorder %s127, %s141
    %p143 = scmp.eq.s32.totalorder %s19, 0
    %p144 = por %p142, %p143
    %s146 = sadd.s32 %s145, 1
    %p149 = scmp.eq.s32.totalorder %s13, 3
    %p150 = scmp.ne.s32.totalorder %s145, %s147
    %p151 = scmp.eq.s32.totalorder %s13, 0
    %p152 = por %p150, %p151
    %p153 = scmp.ne.s32.totalorder %s145, %s147
    %p154 = scmp.eq.s32.totalorder %s18, 3
    %p155 = por %p153, %p154
    %p156 = scmp.ne.s32.totalorder %s147, %s148
    %p157 = scmp.eq.s32.totalorder %s18, 0
    %p158 = por %p156, %p157
    %p159 = scmp.ne.s32.totalorder %s147, %s148
    %p160 = scmp.eq.s32.totalorder %s19, 3
    %p161 = por %p159, %p160
    %p163 = scmp.ne.s32.totalorder %s148, %s162
    %p164 = scmp.eq.s32.totalorder %s19, 0
    %p165 = por %p163, %p164
    %s167 = sadd.s32 %s166, 1
    %p170 = scmp.eq.s32.totalorder %s13, 3
    %p171 = scmp.ne.s32.totalorder %s166, %s168
    %p172 = scmp.eq.s32.totalorder %s13, 0
    %p173 = por %p171, %p172
    %p174 = scmp.ne.s32.totalorder %s166, %s168
    %p175 = scmp.eq.s32.totalorder %s18, 3
    %p176 = por %p174, %p175
    %p177 = scmp.ne.s32.totalorder %s168, %s169
    %p178 = scmp.eq.s32.totalorder %s18, 0
    %p179 = por %p177, %p178
    %p180 = scmp.ne.s32.totalorder %s168, %s169
    %p181 = scmp.eq.s32.totalorder %s19, 3
    %p182 = por %p180, %p181
    %p184 = scmp.ne.s32.totalorder %s169, %s183
    %p185 = scmp.eq.s32.totalorder %s19, 0
    %p186 = por %p184, %p185
    %s187 = ssub.s32 %s20, %s32
    %s188 = ssub.s32 %s21, %s28
    %s189 = sor.u32 %s187, %s188
    %p190 = scmp.eq.s32.totalorder %s189, 0
    %s192 = sadd.s32 %s191, 1
    %s193 = scalar_select %p190, %s191, %s192
    %p196 = pneg %p190
    %p197 = scmp.eq.s32.totalorder %s13, 3
    %p198 = por %p196, %p197
    %p199 = scmp.ne.s32.totalorder %s191, %s194
    %p200 = scmp.eq.s32.totalorder %s13, 0
    %p201 = por %p199, %p200
    %p202 = scmp.ne.s32.totalorder %s191, %s194
    %p203 = scmp.eq.s32.totalorder %s18, 3
    %p204 = por %p202, %p203
    %p205 = scmp.ne.s32.totalorder %s194, %s195
    %p206 = scmp.eq.s32.totalorder %s18, 0
    %p207 = por %p205, %p206
    %p208 = scmp.ne.s32.totalorder %s194, %s195
    %p209 = scmp.eq.s32.totalorder %s19, 3
    %p210 = por %p208, %p209
    %p212 = scmp.ne.s32.totalorder %s195, %s211
    %p213 = scmp.eq.s32.totalorder %s19, 0
    %p214 = por %p212, %p213
    %p215 = scmp.le.s32.totalorder 1, %s13
    %p216 = scmp.lt.s32.totalorder %s13, 5
    %p217 = pnand %p215, %p216
    %p218 = pneg %p217
    // Predicated region
    $region9: #{tpu_custom_call.1} parent=5 // pred_check
      _
    $region10: #{tpu_custom_call.1} parent=5 // pred_check_branch
      %220 = sbr.rel (%p217) target = $region12
    $region11: #{tpu_custom_call.1} parent=5 // pred_region
      %s221 = ssub.s32 %s13, 1
      // Predicated region
      $region13: #{tpu_custom_call.1} parent=11 // pred_check
        %p222 = pneg %p74
      $region14: #{tpu_custom_call.1} parent=11 // pred_check_branch
        %224 = sbr.rel (%p222) target = $region16
      $region15: #{tpu_custom_call.1} parent=11 // pred_region
        _
      $region16: #{tpu_custom_call.1} parent=11 // pred_fallthru
        _
      // Predicated region
      $region17: #{tpu_custom_call.1} parent=11 // pred_check
        %p225 = pneg %p95
      $region18: #{tpu_custom_call.1} parent=11 // pred_check_branch
        %227 = sbr.rel (%p225) target = $region20
      $region19: #{tpu_custom_call.1} parent=11 // pred_region
        _
      $region20: #{tpu_custom_call.1} parent=11 // pred_fallthru
        _
      // Predicated region
      $region21: #{tpu_custom_call.1} parent=11 // pred_check
        %p228 = pneg %p116
      $region22: #{tpu_custom_call.1} parent=11 // pred_check_branch
        %230 = sbr.rel (%p228) target = $region24
      $region23: #{tpu_custom_call.1} parent=11 // pred_region
        _
      $region24: #{tpu_custom_call.1} parent=11 // pred_fallthru
        _
      // Predicated region
      $region25: #{tpu_custom_call.1} parent=11 // pred_check
        %p231 = pneg %p137
      $region26: #{tpu_custom_call.1} parent=11 // pred_check_branch
        %233 = sbr.rel (%p231) target = $region28
      $region27: #{tpu_custom_call.1} parent=11 // pred_region
        _
      $region28: #{tpu_custom_call.1} parent=11 // pred_fallthru
        _
      // Predicated region
      $region29: #{tpu_custom_call.1} parent=11 // pred_check
        %p234 = pneg %p158
      $region30: #{tpu_custom_call.1} parent=11 // pred_check_branch
        %236 = sbr.rel (%p234) target = $region32
      $region31: #{tpu_custom_call.1} parent=11 // pred_region
        _
      $region32: #{tpu_custom_call.1} parent=11 // pred_fallthru
        _
      // Predicated region
      $region33: #{tpu_custom_call.1} parent=11 // pred_check
        %p237 = pneg %p179
      $region34: #{tpu_custom_call.1} parent=11 // pred_check_branch
        %239 = sbr.rel (%p237) target = $region36
      $region35: #{tpu_custom_call.1} parent=11 // pred_region
        _
      $region36: #{tpu_custom_call.1} parent=11 // pred_fallthru
        _
    $region12: #{tpu_custom_call.1} parent=5 // pred_fallthru
      _
    %p240 = scmp.lt.s32.totalorder %s13, 4
    // Predicated region
    $region37: #{tpu_custom_call.1} parent=5 // pred_check
      %p241 = pneg %p240
    $region38: #{tpu_custom_call.1} parent=5 // pred_check_branch
      %243 = sbr.rel (%p241) target = $region40
    $region39: #{tpu_custom_call.1} parent=5 // pred_region
      // Predicated region
      $region41: #{tpu_custom_call.1} parent=39 // pred_check
        %p244 = pneg %p47
      $region42: #{tpu_custom_call.1} parent=39 // pred_check_branch
        %246 = sbr.rel (%p244) target = $region44
      $region43: #{tpu_custom_call.1} parent=39 // pred_region
        %p247 = scmp.lt.s32.totalorder %s20, 1
        %s248 = scalar_select %p247, %s20, 1
        %p249 = scmp.lt.s32.totalorder %s21, 1
        %s250 = scalar_select %p249, %s21, 1
        %s251 = smul.addr %s250, 20
        %s252 = smul.addr %s248, 40
        %s253 = sadd.s32 %s251, %s252
        %s254 = smul.addr %s253, 4
        %s255 = scalar_lea.vmem %s0, %s254
      $region44: #{tpu_custom_call.1} parent=39 // pred_fallthru
        _
    $region40: #{tpu_custom_call.1} parent=5 // pred_fallthru
      _
    %p256 = scmp.le.s32.totalorder 1, %s13
    %p257 = scmp.lt.s32.totalorder %s13, 5
    %p258 = pnand %p256, %p257
    %p259 = pneg %p258
    // Predicated region
    $region45: #{tpu_custom_call.1} parent=5 // pred_check
      _
    $region46: #{tpu_custom_call.1} parent=5 // pred_check_branch
      %261 = sbr.rel (%p258) target = $region48
    $region47: #{tpu_custom_call.1} parent=5 // pred_region
      %s262 = ssub.s32 %s13, 1
      %p263 = scmp.lt.s32.totalorder %s22, 1
      %s264 = scalar_select %p263, %s22, 1
      %p265 = scmp.lt.s32.totalorder %s23, 1
      %s266 = scalar_select %p265, %s23, 1
      %s267 = smul.addr %s266, 20
      %s268 = smul.addr %s264, 40
      %s269 = sadd.s32 %s267, %s268
      %s270 = smul.addr %s269, 4
      %s271 = scalar_lea.vmem %s0, %s270
      %p272 = pneg %p53
      %p273 = pneg %p50
      %p274 = pneg %p74
      %p275 = pneg %p71
      %p276 = pneg %p95
      %p277 = pneg %p92
      %p278 = pneg %p116
      %p279 = pneg %p113
      %p280 = pneg %p137
      %p281 = pneg %p134
      %p282 = pneg %p158
      %p283 = pneg %p155
      %p284 = pneg %p179
      %p285 = pneg %p176
      %p286 = pneg %p207
      %p287 = pneg %p204
      %s288 = smul.u32 16, %s23
      %p289 = scmp.lt.s32.totalorder %s22, 1
      %s290 = scalar_select %p289, %s22, 1
      %p291 = scmp.lt.s32.totalorder %s288, 31
      %s292 = scalar_select %p291, %s288, 31
      %s293 = smul.addr %s290, 32
      %s294 = sadd.s32 %s292, %s293
      %s295 = smul.addr %s294, 8
      %s296 = scalar_lea.vmem %s7, %s295
      %p297 = scmp.lt.s32.totalorder %s22, 1
      %s298 = scalar_select %p297, %s22, 1
      %p299 = scmp.lt.s32.totalorder %s23, 1
      %s300 = scalar_select %p299, %s23, 1
      %s301 = smul.addr %s300, 20
      %s302 = smul.addr %s298, 40
      %s303 = sadd.s32 %s301, %s302
      %s304 = smul.addr %s303, 4
      %s305 = scalar_lea.vmem %s0, %s304
      %s306 = smul.u32 16, %s23
      %p307 = scmp.lt.s32.totalorder %s22, 1
      %s308 = scalar_select %p307, %s22, 1
      %p309 = scmp.lt.s32.totalorder %s306, 31
      %s310 = scalar_select %p309, %s306, 31
      %s311 = smul.addr %s308, 32
      %s312 = sadd.s32 %s310, %s311
      %s313 = smul.addr %s312, 8
      %s314 = scalar_lea.vmem %s7, %s313
      %s315 = smul.u32 16, %s23
      %v317 = vld [vmem:[%s305] sm:$0xf]
      %v318 = vld [vmem:[%s305 + $0x4] sm:$0xf]
      %v319 = vld [vmem:[%s305 + $0x8] sm:$0xf]
      %v320 = vld [vmem:[%s305 + $0xc] sm:$0xf]
      %v321 = vld [vmem:[%s305 + $0x10] sm:$0xf]
      %v322 = vld [vmem:[%s305 + $0x14] sm:$0xf]
      %v323 = vld [vmem:[%s305 + $0x18] sm:$0xf]
      %v324 = vld [vmem:[%s305 + $0x1c] sm:$0xf]
      %v325 = vld [vmem:[%s305 + $0x20] sm:$0xf]
      %v326 = vld [vmem:[%s305 + $0x24] sm:$0xf]
      %v327 = vld [vmem:[%s305 + $0x28] sm:$0xf]
      %v328 = vld [vmem:[%s305 + $0x2c] sm:$0xf]
      %v329 = vld [vmem:[%s305 + $0x30] sm:$0xf]
      %v330 = vld [vmem:[%s305 + $0x34] sm:$0xf]
      %v331 = vld [vmem:[%s305 + $0x38] sm:$0xf]
      %v332 = vld [vmem:[%s305 + $0x3c] sm:$0xf]
      %v333 = vld [vmem:[%s305 + $0x40] sm:$0xf]
      %v334 = vld [vmem:[%s305 + $0x44] sm:$0xf]
      %v335 = vld [vmem:[%s305 + $0x48] sm:$0xf]
      %v336 = vld [vmem:[%s305 + $0x4c] sm:$0xf]
      %v337 = vld [vmem:[%s1] sm:$0x3]
      %v338 = vld [vmem:[%s2] sm:$0x1]
      %v340 = vlaneseq
      %v341 = vshrl.u32 %v340, 7
      %v342 = vsub.s32 0, %v341
      %v343 = vrot.slane %v338, %v342
      %v365 = vunpack.c.l.b16 %v317
      %v366 = vunpack.c.l.b16 %v318
      %v367 = vunpack.c.l.b16 %v319
      %v368 = vunpack.c.l.b16 %v320
      %v369 = vunpack.c.l.b16 %v321
      %v370 = vunpack.c.l.b16 %v322
      %v371 = vunpack.c.l.b16 %v323
      %v372 = vunpack.c.l.b16 %v324
      %v373 = vunpack.c.l.b16 %v325
      %v374 = vunpack.c.l.b16 %v326
      %v375 = vunpack.c.l.b16 %v327
      %v376 = vunpack.c.l.b16 %v328
      %v377 = vunpack.c.l.b16 %v329
      %v378 = vunpack.c.l.b16 %v330
      %v379 = vunpack.c.l.b16 %v331
      %v380 = vunpack.c.l.b16 %v332
      %v381 = vunpack.c.l.b16 %v333
      %v382 = vunpack.c.l.b16 %v334
      %v383 = vunpack.c.l.b16 %v335
      %v384 = vunpack.c.l.b16 %v336
      %v385 = vpack.c.b16 %v366, %v365
      %v386 = vpack.c.b16 %v368, %v367
      %v387 = vpack.c.b16 %v370, %v369
      %v388 = vpack.c.b16 %v372, %v371
      %v389 = vpack.c.b16 %v374, %v373
      %v390 = vpack.c.b16 %v376, %v375
      %v391 = vpack.c.b16 %v378, %v377
      %v392 = vpack.c.b16 %v380, %v379
      %v393 = vpack.c.b16 %v382, %v381
      %v394 = vpack.c.b16 %v384, %v383
      %vm395 = vcmask 31744
      %v397 = vsel %vm395, %v385, 0
      %v400 = vsel %vm395, %v386, 0
      %v403 = vsel %vm395, %v387, 0
      %v406 = vsel %vm395, %v388, 0
      %v409 = vsel %vm395, %v389, 0
      %v412 = vsel %vm395, %v390, 0
      %v415 = vsel %vm395, %v391, 0
      %v418 = vsel %vm395, %v392, 0
      %v421 = vsel %vm395, %v393, 0
      %v424 = vsel %vm395, %v394, 0
      %vm426 = vcmask 1041408
      %v428 = vsel %vm426, %v337, 0
      %430 = vmatprep.subr.bf16.mxu0 0
      %431 = vmatpush1.bf16.msra.mxu0 %v428
      %432 = vmatprep.subr.bf16.mxu0 0
      %433 = vmatpush1.bf16.msra.mxu0 0
      %434 = vmatprep.subr.bf16.mxu0 0
      %435 = vmatpush1.bf16.msra.mxu0 0
      %436 = vmatprep.subr.bf16.mxu0 0
      %437 = vmatpush1.bf16.msra.mxu0 0
      %438 = vmatprep.subr.bf16.mxu0 0
      %439 = vmatpush1.bf16.msra.mxu0 0
      %440 = vmatprep.subr.bf16.mxu0 0
      %441 = vmatpush1.bf16.msra.mxu0 0
      %442 = vmatprep.subr.bf16.mxu0 0
      %443 = vmatpush1.bf16.msra.mxu0 0
      %444 = vmatprep.subr.bf16.mxu0 0
      %445 = vmatpush1.bf16.msra.mxu0 0
      %446 = vmatprep.subr.bf16.mxu0 0
      %447 = vmatpush1.bf16.msra.mxu0 0
      %448 = vmatprep.subr.bf16.mxu0 0
      %449 = vmatpush1.bf16.msra.mxu0 0
      %450 = vmatprep.subr.bf16.mxu0 0
      %451 = vmatpush1.bf16.msra.mxu0 0
      %452 = vmatprep.subr.bf16.mxu0 0
      %453 = vmatpush1.bf16.msra.mxu0 0
      %454 = vmatprep.subr.bf16.mxu0 0
      %455 = vmatpush1.bf16.msra.mxu0 0
      %456 = vmatprep.subr.bf16.mxu0 0
      %457 = vmatpush1.bf16.msra.mxu0 0
      %458 = vmatprep.subr.bf16.mxu0 0
      %459 = vmatpush1.bf16.msra.mxu0 0
      %460 = vmatprep.subr.bf16.mxu0 0
      %461 = vmatpush1.bf16.msra.mxu0 0
      %462 = vmatprep.mubr.bf16.mxu0 0
      %463 = vmatmul.mubr.bf16.gmra.mrb[0].mxu0 %v397
      %v464 = vpop.f32.mrb[0].mxu0
      %v465 = vadd.f32 %v343, %v464
      %v466 = vpop.f32.mrb[0].mxu0
      %v467 = vpop.f32.mrb[0].mxu0
      %v468 = vadd.f32 %v343, %v467
      %v469 = vpop.f32.mrb[0].mxu0
      %470 = vmatprep.mubr.bf16.mxu0 0
      %471 = vmatmul.mubr.bf16.gmra.mrb[0].mxu0 %v400
      %v472 = vpop.f32.mrb[0].mxu0
      %v473 = vadd.f32 %v343, %v472
      %v474 = vpop.f32.mrb[0].mxu0
      %v475 = vpop.f32.mrb[0].mxu0
      %v476 = vadd.f32 %v343, %v475
      %v477 = vpop.f32.mrb[0].mxu0
      %478 = vmatprep.mubr.bf16.mxu0 0
      %479 = vmatmul.mubr.bf16.gmra.mrb[0].mxu0 %v403
      %v480 = vpop.f32.mrb[0].mxu0
      %v481 = vadd.f32 %v343, %v480
      %v482 = vpop.f32.mrb[0].mxu0
      %v483 = vpop.f32.mrb[0].mxu0
      %v484 = vadd.f32 %v343, %v483
      %v485 = vpop.f32.mrb[0].mxu0
      %486 = vmatprep.mubr.bf16.mxu0 0
      %487 = vmatmul.mubr.bf16.gmra.mrb[0].mxu0 %v406
      %v488 = vpop.f32.mrb[0].mxu0
      %v489 = vadd.f32 %v343, %v488
      %v490 = vpop.f32.mrb[0].mxu0
      %v491 = vpop.f32.mrb[0].mxu0
      %v492 = vadd.f32 %v343, %v491
      %v493 = vpop.f32.mrb[0].mxu0
      %494 = vmatprep.mubr.bf16.mxu0 0
      %495 = vmatmul.mubr.bf16.gmra.mrb[0].mxu0 %v409
      %v496 = vpop.f32.mrb[0].mxu0
      %v497 = vadd.f32 %v343, %v496
      %v498 = vpop.f32.mrb[0].mxu0
      %v499 = vpop.f32.mrb[0].mxu0
      %v500 = vadd.f32 %v343, %v499
      %v501 = vpop.f32.mrb[0].mxu0
      %502 = vmatprep.mubr.bf16.mxu0 0
      %503 = vmatmul.mubr.bf16.gmra.mrb[0].mxu0 %v412
      %v504 = vpop.f32.mrb[0].mxu0
      %v505 = vadd.f32 %v343, %v504
      %v506 = vpop.f32.mrb[0].mxu0
      %v507 = vpop.f32.mrb[0].mxu0
      %v508 = vadd.f32 %v343, %v507
      %v509 = vpop.f32.mrb[0].mxu0
      %510 = vmatprep.mubr.bf16.mxu0 0
      %511 = vmatmul.mubr.bf16.gmra.mrb[0].mxu0 %v415
      %v512 = vpop.f32.mrb[0].mxu0
      %v513 = vadd.f32 %v343, %v512
      %v514 = vpop.f32.mrb[0].mxu0
      %v515 = vpop.f32.mrb[0].mxu0
      %v516 = vadd.f32 %v343, %v515
      %v517 = vpop.f32.mrb[0].mxu0
      %518 = vmatprep.mubr.bf16.mxu0 0
      %519 = vmatmul.mubr.bf16.gmra.mrb[0].mxu0 %v418
      %v520 = vpop.f32.mrb[0].mxu0
      %v521 = vadd.f32 %v343, %v520
      %v522 = vpop.f32.mrb[0].mxu0
      %v523 = vpop.f32.mrb[0].mxu0
      %v524 = vadd.f32 %v343, %v523
      %v525 = vpop.f32.mrb[0].mxu0
      %526 = vmatprep.mubr.bf16.mxu0 0
      %527 = vmatmul.mubr.bf16.gmra.mrb[0].mxu0 %v421
      %v528 = vpop.f32.mrb[0].mxu0
      %v529 = vadd.f32 %v343, %v528
      %v530 = vpop.f32.mrb[0].mxu0
      %v531 = vpop.f32.mrb[0].mxu0
      %v532 = vadd.f32 %v343, %v531
      %v533 = vpop.f32.mrb[0].mxu0
      %534 = vmatprep.mubr.bf16.mxu0 0
      %535 = vmatmul.mubr.bf16.gmra.mrb[0].mxu0 %v424
      %v536 = vpop.f32.mrb[0].mxu0
      %v537 = vadd.f32 %v343, %v536
      %v538 = vpop.f32.mrb[0].mxu0
      %v539 = vpop.f32.mrb[0].mxu0
      %v540 = vadd.f32 %v343, %v539
      %v541 = vpop.f32.mrb[0].mxu0
      %542 = vdwg.mxu0
      %s543 = smul.u32 %s23, 8
      %v544 = vstv %s543
      %v545 = vadd.s32 %v544, 1
      %v546 = vadd.s32 %v544, 2
      %v547 = vadd.s32 %v544, 3
      %v548 = vadd.s32 %v544, 4
      %v549 = vadd.s32 %v544, 5
      %v550 = vadd.s32 %v544, 6
      %v551 = vadd.s32 %v544, 7
      %v552 = vadd.s32 %v544, 8
      %v553 = vadd.s32 %v544, 9
      %vm554 = vcmp.ge.s32.totalorder %v544, 1
      %vm555 = vcmp.ge.s32.totalorder %v545, 1
      %vm556 = vcmp.ge.s32.totalorder %v546, 1
      %vm557 = vcmp.ge.s32.totalorder %v547, 1
      %vm558 = vcmp.ge.s32.totalorder %v548, 1
      %vm559 = vcmp.ge.s32.totalorder %v549, 1
      %vm560 = vcmp.ge.s32.totalorder %v550, 1
      %vm561 = vcmp.ge.s32.totalorder %v551, 1
      %vm562 = vcmp.ge.s32.totalorder %v552, 1
      %vm563 = vcmp.ge.s32.totalorder %v553, 1
      %vm564 = vcmp.le.s32.totalorder %v544, 16
      %vm565 = vcmp.le.s32.totalorder %v545, 16
      %vm566 = vcmp.le.s32.totalorder %v546, 16
      %vm567 = vcmp.le.s32.totalorder %v547, 16
      %vm568 = vcmp.le.s32.totalorder %v548, 16
      %vm569 = vcmp.le.s32.totalorder %v549, 16
      %vm570 = vcmp.le.s32.totalorder %v550, 16
      %vm571 = vcmp.le.s32.totalorder %v551, 16
      %vm572 = vcmp.le.s32.totalorder %v552, 16
      %vm573 = vcmp.le.s32.totalorder %v553, 16
      %vm574 = vmand %vm554, %vm564
      %vm575 = vmand %vm555, %vm565
      %vm576 = vmand %vm556, %vm566
      %vm577 = vmand %vm557, %vm567
      %vm578 = vmand %vm558, %vm568
      %vm579 = vmand %vm559, %vm569
      %vm580 = vmand %vm560, %vm570
      %vm581 = vmand %vm561, %vm571
      %vm582 = vmand %vm562, %vm572
      %vm583 = vmand %vm563, %vm573
      %v584 = vsel %vm574, %v465, 0.0
      %v585 = vsel %vm574, %v468, 0.0
      %v586 = vsel %vm575, %v473, 0.0
      %v587 = vsel %vm575, %v476, 0.0
      %v588 = vsel %vm576, %v481, 0.0
      %v589 = vsel %vm576, %v484, 0.0
      %v590 = vsel %vm577, %v489, 0.0
      %v591 = vsel %vm577, %v492, 0.0
      %v592 = vsel %vm578, %v497, 0.0
      %v593 = vsel %vm578, %v500, 0.0
      %v594 = vsel %vm579, %v505, 0.0
      %v595 = vsel %vm579, %v508, 0.0
      %v596 = vsel %vm580, %v513, 0.0
      %v597 = vsel %vm580, %v516, 0.0
      %v598 = vsel %vm581, %v521, 0.0
      %v599 = vsel %vm581, %v524, 0.0
      %v600 = vsel %vm582, %v529, 0.0
      %v601 = vsel %vm582, %v532, 0.0
      %v602 = vsel %vm583, %v537, 0.0
      %v603 = vsel %vm583, %v540, 0.0
      %v604 = vlaneseq
      %v605 = vshrl.u32 %v604, 7
      %v606 = vadd.s32 %v605, 8
      %vm607 = vcmp.eq.s32.totalorder %v605, 0
      %vm608 = vcmp.eq.s32.totalorder %v606, 0
      %v609 = vrot.slane %v584, 7
      %v610 = vrot.slane %v586, 7
      %v611 = vrot.slane %v588, 7
      %v612 = vrot.slane %v590, 7
      %v613 = vrot.slane %v592, 7
      %v614 = vrot.slane %v594, 7
      %v615 = vrot.slane %v596, 7
      %v616 = vrot.slane %v598, 7
      %v617 = vrot.slane %v600, 7
      %v618 = vrot.slane %v602, 7
      %v619 = vrot.slane %v585, 7
      %v620 = vrot.slane %v587, 7
      %v621 = vrot.slane %v589, 7
      %v622 = vrot.slane %v591, 7
      %v623 = vrot.slane %v593, 7
      %v624 = vrot.slane %v595, 7
      %v625 = vrot.slane %v597, 7
      %v626 = vrot.slane %v599, 7
      %v627 = vrot.slane %v601, 7
      %v628 = vrot.slane %v603, 7
      %vm629 = vcmp.lt.s32.totalorder %v605, 1
      %v630 = vsel %vm629, %v609, %v619
      %v631 = vsel %vm629, %v610, %v620
      %v632 = vsel %vm629, %v611, %v621
      %v633 = vsel %vm629, %v612, %v622
      %v634 = vsel %vm629, %v613, %v623
      %v635 = vsel %vm629, %v614, %v624
      %v636 = vsel %vm629, %v615, %v625
      %v637 = vsel %vm629, %v616, %v626
      %v638 = vsel %vm629, %v617, %v627
      %v639 = vsel %vm629, %v618, %v628
      %v640 = vsel %vm629, %v619, %v609
      %v641 = vsel %vm629, %v620, %v610
      %v642 = vsel %vm629, %v621, %v611
      %v643 = vsel %vm629, %v622, %v612
      %v644 = vsel %vm629, %v623, %v613
      %v645 = vsel %vm629, %v624, %v614
      %v646 = vsel %vm629, %v625, %v615
      %v647 = vsel %vm629, %v626, %v616
      %v648 = vsel %vm629, %v627, %v617
      %v649 = vsel %vm629, %v628, %v618
      %v650 = vsel %vm607, 0.0, %v640
      %v651 = vsel %vm608, 0.0, %v630
      %v652 = vsel %vm607, 0.0, %v641
      %v653 = vsel %vm608, 0.0, %v631
      %v654 = vsel %vm607, 0.0, %v642
      %v655 = vsel %vm608, 0.0, %v632
      %v656 = vsel %vm607, 0.0, %v643
      %v657 = vsel %vm608, 0.0, %v633
      %v658 = vsel %vm607, 0.0, %v644
      %v659 = vsel %vm608, 0.0, %v634
      %v660 = vsel %vm607, 0.0, %v645
      %v661 = vsel %vm608, 0.0, %v635
      %v662 = vsel %vm607, 0.0, %v646
      %v663 = vsel %vm608, 0.0, %v636
      %v664 = vsel %vm607, 0.0, %v647
      %v665 = vsel %vm608, 0.0, %v637
      %v666 = vsel %vm607, 0.0, %v648
      %v667 = vsel %vm608, 0.0, %v638
      %v668 = vsel %vm607, 0.0, %v649
      %v669 = vsel %vm608, 0.0, %v639
      %vm670 = vcmp.eq.s32.totalorder %v605, 15
      %vm671 = vcmp.eq.s32.totalorder %v606, 15
      %v672 = vrot.slane %v584, 1
      %v673 = vrot.slane %v586, 1
      %v674 = vrot.slane %v588, 1
      %v675 = vrot.slane %v590, 1
      %v676 = vrot.slane %v592, 1
      %v677 = vrot.slane %v594, 1
      %v678 = vrot.slane %v596, 1
      %v679 = vrot.slane %v598, 1
      %v680 = vrot.slane %v600, 1
      %v681 = vrot.slane %v602, 1
      %v682 = vrot.slane %v585, 1
      %v683 = vrot.slane %v587, 1
      %v684 = vrot.slane %v589, 1
      %v685 = vrot.slane %v591, 1
      %v686 = vrot.slane %v593, 1
      %v687 = vrot.slane %v595, 1
      %v688 = vrot.slane %v597, 1
      %v689 = vrot.slane %v599, 1
      %v690 = vrot.slane %v601, 1
      %v691 = vrot.slane %v603, 1
      %vm692 = vcmp.lt.s32.totalorder %v605, 7
      %v693 = vsel %vm692, %v672, %v682
      %v694 = vsel %vm692, %v673, %v683
      %v695 = vsel %vm692, %v674, %v684
      %v696 = vsel %vm692, %v675, %v685
      %v697 = vsel %vm692, %v676, %v686
      %v698 = vsel %vm692, %v677, %v687
      %v699 = vsel %vm692, %v678, %v688
      %v700 = vsel %vm692, %v679, %v689
      %v701 = vsel %vm692, %v680, %v690
      %v702 = vsel %vm692, %v681, %v691
      %v703 = vsel %vm692, %v682, %v672
      %v704 = vsel %vm692, %v683, %v673
      %v705 = vsel %vm692, %v684, %v674
      %v706 = vsel %vm692, %v685, %v675
      %v707 = vsel %vm692, %v686, %v676
      %v708 = vsel %vm692, %v687, %v677
      %v709 = vsel %vm692, %v688, %v678
      %v710 = vsel %vm692, %v689, %v679
      %v711 = vsel %vm692, %v690, %v680
      %v712 = vsel %vm692, %v691, %v681
      %v713 = vsel %vm670, 0.0, %v693
      %v714 = vsel %vm671, 0.0, %v703
      %v715 = vsel %vm670, 0.0, %v694
      %v716 = vsel %vm671, 0.0, %v704
      %v717 = vsel %vm670, 0.0, %v695
      %v718 = vsel %vm671, 0.0, %v705
      %v719 = vsel %vm670, 0.0, %v696
      %v720 = vsel %vm671, 0.0, %v706
      %v721 = vsel %vm670, 0.0, %v697
      %v722 = vsel %vm671, 0.0, %v707
      %v723 = vsel %vm670, 0.0, %v698
      %v724 = vsel %vm671, 0.0, %v708
      %v725 = vsel %vm670, 0.0, %v699
      %v726 = vsel %vm671, 0.0, %v709
      %v727 = vsel %vm670, 0.0, %v700
      %v728 = vsel %vm671, 0.0, %v710
      %v729 = vsel %vm670, 0.0, %v701
      %v730 = vsel %vm671, 0.0, %v711
      %v731 = vsel %vm670, 0.0, %v702
      %v732 = vsel %vm671, 0.0, %v712
      %v733 = vld [vmem:[%s3] sm:$0x7]
      %v734 = vld [vmem:[%s3 + $0x4] sm:$0x7]
      %v735 = vld [vmem:[%s3 + $0x8] sm:$0x7]
      %v736 = vlaneseq
      %v737 = vshrl.u32 %v736, 7
      %v738 = vsub.s32 0, %v737
      %v739 = vrot.slane %v733, %v738
      %v740 = vmul.f32 %v650, %v739
      %v741 = vmul.f32 %v651, %v739
      %v742 = vmul.f32 %v652, %v739
      %v743 = vmul.f32 %v653, %v739
      %v744 = vmul.f32 %v654, %v739
      %v745 = vmul.f32 %v655, %v739
      %v746 = vmul.f32 %v656, %v739
      %v747 = vmul.f32 %v657, %v739
      %v748 = vmul.f32 %v658, %v739
      %v749 = vmul.f32 %v659, %v739
      %v750 = vmul.f32 %v660, %v739
      %v751 = vmul.f32 %v661, %v739
      %v752 = vmul.f32 %v662, %v739
      %v753 = vmul.f32 %v663, %v739
      %v754 = vmul.f32 %v664, %v739
      %v755 = vmul.f32 %v665, %v739
      %v756 = vlaneseq
      %v757 = vshrl.u32 %v756, 7
      %v758 = vsub.s32 1, %v757
      %v759 = vrot.slane %v733, %v758
      %v760 = vmul.f32 %v584, %v759
      %v761 = vmul.f32 %v585, %v759
      %v762 = vmul.f32 %v586, %v759
      %v763 = vmul.f32 %v587, %v759
      %v764 = vmul.f32 %v588, %v759
      %v765 = vmul.f32 %v589, %v759
      %v766 = vmul.f32 %v590, %v759
      %v767 = vmul.f32 %v591, %v759
      %v768 = vmul.f32 %v592, %v759
      %v769 = vmul.f32 %v593, %v759
      %v770 = vmul.f32 %v594, %v759
      %v771 = vmul.f32 %v595, %v759
      %v772 = vmul.f32 %v596, %v759
      %v773 = vmul.f32 %v597, %v759
      %v774 = vmul.f32 %v598, %v759
      %v775 = vmul.f32 %v599, %v759
      %v776 = vadd.f32 %v740, %v760
      %v777 = vadd.f32 %v741, %v761
      %v778 = vadd.f32 %v742, %v762
      %v779 = vadd.f32 %v743, %v763
      %v780 = vadd.f32 %v744, %v764
      %v781 = vadd.f32 %v745, %v765
      %v782 = vadd.f32 %v746, %v766
      %v783 = vadd.f32 %v747, %v767
      %v784 = vadd.f32 %v748, %v768
      %v785 = vadd.f32 %v749, %v769
      %v786 = vadd.f32 %v750, %v770
      %v787 = vadd.f32 %v751, %v771
      %v788 = vadd.f32 %v752, %v772
      %v789 = vadd.f32 %v753, %v773
      %v790 = vadd.f32 %v754, %v774
      %v791 = vadd.f32 %v755, %v775
      %v792 = vlaneseq
      %v793 = vshrl.u32 %v792, 7
      %v794 = vsub.s32 2, %v793
      %v795 = vrot.slane %v733, %v794
      %v796 = vmul.f32 %v713, %v795
      %v797 = vmul.f32 %v714, %v795
      %v798 = vmul.f32 %v715, %v795
      %v799 = vmul.f32 %v716, %v795
      %v800 = vmul.f32 %v717, %v795
      %v801 = vmul.f32 %v718, %v795
      %v802 = vmul.f32 %v719, %v795
      %v803 = vmul.f32 %v720, %v795
      %v804 = vmul.f32 %v721, %v795
      %v805 = vmul.f32 %v722, %v795
      %v806 = vmul.f32 %v723, %v795
      %v807 = vmul.f32 %v724, %v795
      %v808 = vmul.f32 %v725, %v795
      %v809 = vmul.f32 %v726, %v795
      %v810 = vmul.f32 %v727, %v795
      %v811 = vmul.f32 %v728, %v795
      %v812 = vadd.f32 %v776, %v796
      %v813 = vadd.f32 %v777, %v797
      %v814 = vadd.f32 %v778, %v798
      %v815 = vadd.f32 %v779, %v799
      %v816 = vadd.f32 %v780, %v800
      %v817 = vadd.f32 %v781, %v801
      %v818 = vadd.f32 %v782, %v802
      %v819 = vadd.f32 %v783, %v803
      %v820 = vadd.f32 %v784, %v804
      %v821 = vadd.f32 %v785, %v805
      %v822 = vadd.f32 %v786, %v806
      %v823 = vadd.f32 %v787, %v807
      %v824 = vadd.f32 %v788, %v808
      %v825 = vadd.f32 %v789, %v809
      %v826 = vadd.f32 %v790, %v810
      %v827 = vadd.f32 %v791, %v811
      %v828 = vlaneseq
      %v829 = vshrl.u32 %v828, 7
      %v830 = vsub.s32 0, %v829
      %v831 = vrot.slane %v734, %v830
      %v832 = vmul.f32 %v652, %v831
      %v833 = vmul.f32 %v653, %v831
      %v834 = vmul.f32 %v654, %v831
      %v835 = vmul.f32 %v655, %v831
      %v836 = vmul.f32 %v656, %v831
      %v837 = vmul.f32 %v657, %v831
      %v838 = vmul.f32 %v658, %v831
      %v839 = vmul.f32 %v659, %v831
      %v840 = vmul.f32 %v660, %v831
      %v841 = vmul.f32 %v661, %v831
      %v842 = vmul.f32 %v662, %v831
      %v843 = vmul.f32 %v663, %v831
      %v844 = vmul.f32 %v664, %v831
      %v845 = vmul.f32 %v665, %v831
      %v846 = vmul.f32 %v666, %v831
      %v847 = vmul.f32 %v667, %v831
      %v848 = vadd.f32 %v812, %v832
      %v849 = vadd.f32 %v813, %v833
      %v850 = vadd.f32 %v814, %v834
      %v851 = vadd.f32 %v815, %v835
      %v852 = vadd.f32 %v816, %v836
      %v853 = vadd.f32 %v817, %v837
      %v854 = vadd.f32 %v818, %v838
      %v855 = vadd.f32 %v819, %v839
      %v856 = vadd.f32 %v820, %v840
      %v857 = vadd.f32 %v821, %v841
      %v858 = vadd.f32 %v822, %v842
      %v859 = vadd.f32 %v823, %v843
      %v860 = vadd.f32 %v824, %v844
      %v861 = vadd.f32 %v825, %v845
      %v862 = vadd.f32 %v826, %v846
      %v863 = vadd.f32 %v827, %v847
      %v864 = vlaneseq
      %v865 = vshrl.u32 %v864, 7
      %v866 = vsub.s32 1, %v865
      %v867 = vrot.slane %v734, %v866
      %v868 = vmul.f32 %v586, %v867
      %v869 = vmul.f32 %v587, %v867
      %v870 = vmul.f32 %v588, %v867
      %v871 = vmul.f32 %v589, %v867
      %v872 = vmul.f32 %v590, %v867
      %v873 = vmul.f32 %v591, %v867
      %v874 = vmul.f32 %v592, %v867
      %v875 = vmul.f32 %v593, %v867
      %v876 = vmul.f32 %v594, %v867
      %v877 = vmul.f32 %v595, %v867
      %v878 = vmul.f32 %v596, %v867
      %v879 = vmul.f32 %v597, %v867
      %v880 = vmul.f32 %v598, %v867
      %v881 = vmul.f32 %v599, %v867
      %v882 = vmul.f32 %v600, %v867
      %v883 = vmul.f32 %v601, %v867
      %v884 = vadd.f32 %v848, %v868
      %v885 = vadd.f32 %v849, %v869
      %v886 = vadd.f32 %v850, %v870
      %v887 = vadd.f32 %v851, %v871
      %v888 = vadd.f32 %v852, %v872
      %v889 = vadd.f32 %v853, %v873
      %v890 = vadd.f32 %v854, %v874
      %v891 = vadd.f32 %v855, %v875
      %v892 = vadd.f32 %v856, %v876
      %v893 = vadd.f32 %v857, %v877
      %v894 = vadd.f32 %v858, %v878
      %v895 = vadd.f32 %v859, %v879
      %v896 = vadd.f32 %v860, %v880
      %v897 = vadd.f32 %v861, %v881
      %v898 = vadd.f32 %v862, %v882
      %v899 = vadd.f32 %v863, %v883
      %v900 = vlaneseq
      %v901 = vshrl.u32 %v900, 7
      %v902 = vsub.s32 2, %v901
      %v903 = vrot.slane %v734, %v902
      %v904 = vmul.f32 %v715, %v903
      %v905 = vmul.f32 %v716, %v903
      %v906 = vmul.f32 %v717, %v903
      %v907 = vmul.f32 %v718, %v903
      %v908 = vmul.f32 %v719, %v903
      %v909 = vmul.f32 %v720, %v903
      %v910 = vmul.f32 %v721, %v903
      %v911 = vmul.f32 %v722, %v903
      %v912 = vmul.f32 %v723, %v903
      %v913 = vmul.f32 %v724, %v903
      %v914 = vmul.f32 %v725, %v903
      %v915 = vmul.f32 %v726, %v903
      %v916 = vmul.f32 %v727, %v903
      %v917 = vmul.f32 %v728, %v903
      %v918 = vmul.f32 %v729, %v903
      %v919 = vmul.f32 %v730, %v903
      %v920 = vadd.f32 %v884, %v904
      %v921 = vadd.f32 %v885, %v905
      %v922 = vadd.f32 %v886, %v906
      %v923 = vadd.f32 %v887, %v907
      %v924 = vadd.f32 %v888, %v908
      %v925 = vadd.f32 %v889, %v909
      %v926 = vadd.f32 %v890, %v910
      %v927 = vadd.f32 %v891, %v911
      %v928 = vadd.f32 %v892, %v912
      %v929 = vadd.f32 %v893, %v913
      %v930 = vadd.f32 %v894, %v914
      %v931 = vadd.f32 %v895, %v915
      %v932 = vadd.f32 %v896, %v916
      %v933 = vadd.f32 %v897, %v917
      %v934 = vadd.f32 %v898, %v918
      %v935 = vadd.f32 %v899, %v919
      %v936 = vlaneseq
      %v937 = vshrl.u32 %v936, 7
      %v938 = vsub.s32 0, %v937
      %v939 = vrot.slane %v735, %v938
      %v940 = vmul.f32 %v654, %v939
      %v941 = vmul.f32 %v655, %v939
      %v942 = vmul.f32 %v656, %v939
      %v943 = vmul.f32 %v657, %v939
      %v944 = vmul.f32 %v658, %v939
      %v945 = vmul.f32 %v659, %v939
      %v946 = vmul.f32 %v660, %v939
      %v947 = vmul.f32 %v661, %v939
      %v948 = vmul.f32 %v662, %v939
      %v949 = vmul.f32 %v663, %v939
      %v950 = vmul.f32 %v664, %v939
      %v951 = vmul.f32 %v665, %v939
      %v952 = vmul.f32 %v666, %v939
      %v953 = vmul.f32 %v667, %v939
      %v954 = vmul.f32 %v668, %v939
      %v955 = vmul.f32 %v669, %v939
      %v956 = vadd.f32 %v920, %v940
      %v957 = vadd.f32 %v921, %v941
      %v958 = vadd.f32 %v922, %v942
      %v959 = vadd.f32 %v923, %v943
      %v960 = vadd.f32 %v924, %v944
      %v961 = vadd.f32 %v925, %v945
      %v962 = vadd.f32 %v926, %v946
      %v963 = vadd.f32 %v927, %v947
      %v964 = vadd.f32 %v928, %v948
      %v965 = vadd.f32 %v929, %v949
      %v966 = vadd.f32 %v930, %v950
      %v967 = vadd.f32 %v931, %v951
      %v968 = vadd.f32 %v932, %v952
      %v969 = vadd.f32 %v933, %v953
      %v970 = vadd.f32 %v934, %v954
      %v971 = vadd.f32 %v935, %v955
      %v972 = vlaneseq
      %v973 = vshrl.u32 %v972, 7
      %v974 = vsub.s32 1, %v973
      %v975 = vrot.slane %v735, %v974
      %v976 = vmul.f32 %v588, %v975
      %v977 = vmul.f32 %v589, %v975
      %v978 = vmul.f32 %v590, %v975
      %v979 = vmul.f32 %v591, %v975
      %v980 = vmul.f32 %v592, %v975
      %v981 = vmul.f32 %v593, %v975
      %v982 = vmul.f32 %v594, %v975
      %v983 = vmul.f32 %v595, %v975
      %v984 = vmul.f32 %v596, %v975
      %v985 = vmul.f32 %v597, %v975
      %v986 = vmul.f32 %v598, %v975
      %v987 = vmul.f32 %v599, %v975
      %v988 = vmul.f32 %v600, %v975
      %v989 = vmul.f32 %v601, %v975
      %v990 = vmul.f32 %v602, %v975
      %v991 = vmul.f32 %v603, %v975
      %v992 = vadd.f32 %v956, %v976
      %v993 = vadd.f32 %v957, %v977
      %v994 = vadd.f32 %v958, %v978
      %v995 = vadd.f32 %v959, %v979
      %v996 = vadd.f32 %v960, %v980
      %v997 = vadd.f32 %v961, %v981
      %v998 = vadd.f32 %v962, %v982
      %v999 = vadd.f32 %v963, %v983
      %v1000 = vadd.f32 %v964, %v984
      %v1001 = vadd.f32 %v965, %v985
      %v1002 = vadd.f32 %v966, %v986
      %v1003 = vadd.f32 %v967, %v987
      %v1004 = vadd.f32 %v968, %v988
      %v1005 = vadd.f32 %v969, %v989
      %v1006 = vadd.f32 %v970, %v990
      %v1007 = vadd.f32 %v971, %v991
      %v1008 = vlaneseq
      %v1009 = vshrl.u32 %v1008, 7
      %v1010 = vsub.s32 2, %v1009
      %v1011 = vrot.slane %v735, %v1010
      %v1012 = vmul.f32 %v717, %v1011
      %v1013 = vmul.f32 %v718, %v1011
      %v1014 = vmul.f32 %v719, %v1011
      %v1015 = vmul.f32 %v720, %v1011
      %v1016 = vmul.f32 %v721, %v1011
      %v1017 = vmul.f32 %v722, %v1011
      %v1018 = vmul.f32 %v723, %v1011
      %v1019 = vmul.f32 %v724, %v1011
      %v1020 = vmul.f32 %v725, %v1011
      %v1021 = vmul.f32 %v726, %v1011
      %v1022 = vmul.f32 %v727, %v1011
      %v1023 = vmul.f32 %v728, %v1011
      %v1024 = vmul.f32 %v729, %v1011
      %v1025 = vmul.f32 %v730, %v1011
      %v1026 = vmul.f32 %v731, %v1011
      %v1027 = vmul.f32 %v732, %v1011
      %v1028 = vadd.f32 %v992, %v1012
      %v1029 = vadd.f32 %v993, %v1013
      %v1030 = vadd.f32 %v994, %v1014
      %v1031 = vadd.f32 %v995, %v1015
      %v1032 = vadd.f32 %v996, %v1016
      %v1033 = vadd.f32 %v997, %v1017
      %v1034 = vadd.f32 %v998, %v1018
      %v1035 = vadd.f32 %v999, %v1019
      %v1036 = vadd.f32 %v1000, %v1020
      %v1037 = vadd.f32 %v1001, %v1021
      %v1038 = vadd.f32 %v1002, %v1022
      %v1039 = vadd.f32 %v1003, %v1023
      %v1040 = vadd.f32 %v1004, %v1024
      %v1041 = vadd.f32 %v1005, %v1025
      %v1042 = vadd.f32 %v1006, %v1026
      %v1043 = vadd.f32 %v1007, %v1027
      %v1044 = vld [vmem:[%s4] sm:$0x1]
      %v1046 = vlaneseq
      %v1047 = vshrl.u32 %v1046, 7
      %v1048 = vsub.s32 0, %v1047
      %v1049 = vrot.slane %v1044, %v1048
      %v1051 = vadd.f32 %v1028, %v1049
      %v1052 = vadd.f32 %v1029, %v1049
      %v1053 = vadd.f32 %v1030, %v1049
      %v1054 = vadd.f32 %v1031, %v1049
      %v1055 = vadd.f32 %v1032, %v1049
      %v1056 = vadd.f32 %v1033, %v1049
      %v1057 = vadd.f32 %v1034, %v1049
      %v1058 = vadd.f32 %v1035, %v1049
      %v1059 = vadd.f32 %v1036, %v1049
      %v1060 = vadd.f32 %v1037, %v1049
      %v1061 = vadd.f32 %v1038, %v1049
      %v1062 = vadd.f32 %v1039, %v1049
      %v1063 = vadd.f32 %v1040, %v1049
      %v1064 = vadd.f32 %v1041, %v1049
      %v1065 = vadd.f32 %v1042, %v1049
      %v1066 = vadd.f32 %v1043, %v1049
      %v1067 = vmax.f32 %v1051, 0.0
      %v1068 = vmax.f32 %v1052, 0.0
      %v1069 = vmax.f32 %v1053, 0.0
      %v1070 = vmax.f32 %v1054, 0.0
      %v1071 = vmax.f32 %v1055, 0.0
      %v1072 = vmax.f32 %v1056, 0.0
      %v1073 = vmax.f32 %v1057, 0.0
      %v1074 = vmax.f32 %v1058, 0.0
      %v1075 = vmax.f32 %v1059, 0.0
      %v1076 = vmax.f32 %v1060, 0.0
      %v1077 = vmax.f32 %v1061, 0.0
      %v1078 = vmax.f32 %v1062, 0.0
      %v1079 = vmax.f32 %v1063, 0.0
      %v1080 = vmax.f32 %v1064, 0.0
      %v1081 = vmax.f32 %v1065, 0.0
      %v1082 = vmax.f32 %v1066, 0.0
      %v1083 = vpack.c.bf16 %v1068, %v1067
      %v1084 = vpack.c.bf16 %v1070, %v1069
      %v1085 = vpack.c.bf16 %v1072, %v1071
      %v1086 = vpack.c.bf16 %v1074, %v1073
      %v1087 = vpack.c.bf16 %v1076, %v1075
      %v1088 = vpack.c.bf16 %v1078, %v1077
      %v1089 = vpack.c.bf16 %v1080, %v1079
      %v1090 = vpack.c.bf16 %v1082, %v1081
      %v1091 = vld [vmem:[%s5] sm:$0xf]
      %v1092 = vld [vmem:[%s6] sm:$0x1]
      %v1094 = vlaneseq
      %v1095 = vshrl.u32 %v1094, 7
      %v1096 = vsub.s32 0, %v1095
      %v1097 = vrot.slane %v1092, %v1096
      %vm1099 = vcmask 64512
      %v1101 = vsel %vm1099, %v1083, 0
      %v1104 = vsel %vm1099, %v1084, 0
      %v1107 = vsel %vm1099, %v1085, 0
      %v1110 = vsel %vm1099, %v1086, 0
      %v1113 = vsel %vm1099, %v1087, 0
      %v1116 = vsel %vm1099, %v1088, 0
      %v1119 = vsel %vm1099, %v1089, 0
      %v1122 = vsel %vm1099, %v1090, 0
      %vm1124 = vcmask 1043456
      %v1126 = vsel %vm1124, %v1091, 0
      %1128 = vmatprep.subr.bf16.mxu0 0
      %1129 = vmatpush1.bf16.msra.mxu0 %v1126
      %1130 = vmatprep.subr.bf16.mxu0 0
      %1131 = vmatpush1.bf16.msra.mxu0 0
      %1132 = vmatprep.subr.bf16.mxu0 0
      %1133 = vmatpush1.bf16.msra.mxu0 0
      %1134 = vmatprep.subr.bf16.mxu0 0
      %1135 = vmatpush1.bf16.msra.mxu0 0
      %1136 = vmatprep.subr.bf16.mxu0 0
      %1137 = vmatpush1.bf16.msra.mxu0 0
      %1138 = vmatprep.subr.bf16.mxu0 0
      %1139 = vmatpush1.bf16.msra.mxu0 0
      %1140 = vmatprep.subr.bf16.mxu0 0
      %1141 = vmatpush1.bf16.msra.mxu0 0
      %1142 = vmatprep.subr.bf16.mxu0 0
      %1143 = vmatpush1.bf16.msra.mxu0 0
      %1144 = vmatprep.subr.bf16.mxu0 0
      %1145 = vmatpush1.bf16.msra.mxu0 0
      %1146 = vmatprep.subr.bf16.mxu0 0
      %1147 = vmatpush1.bf16.msra.mxu0 0
      %1148 = vmatprep.subr.bf16.mxu0 0
      %1149 = vmatpush1.bf16.msra.mxu0 0
      %1150 = vmatprep.subr.bf16.mxu0 0
      %1151 = vmatpush1.bf16.msra.mxu0 0
      %1152 = vmatprep.subr.bf16.mxu0 0
      %1153 = vmatpush1.bf16.msra.mxu0 0
      %1154 = vmatprep.subr.bf16.mxu0 0
      %1155 = vmatpush1.bf16.msra.mxu0 0
      %1156 = vmatprep.subr.bf16.mxu0 0
      %1157 = vmatpush1.bf16.msra.mxu0 0
      %1158 = vmatprep.subr.bf16.mxu0 0
      %1159 = vmatpush1.bf16.msra.mxu0 0
      %1160 = vmatprep.mubr.bf16.mxu0 0
      %1161 = vmatmul.mubr.bf16.gmra.mrb[0].mxu0 %v1101
      %v1162 = vpop.f32.mrb[0].mxu0
      %v1163 = vadd.f32 %v1097, %v1162
      %v1164 = vpop.f32.mrb[0].mxu0
      %v1165 = vpop.f32.mrb[0].mxu0
      %v1166 = vadd.f32 %v1097, %v1165
      %v1167 = vpop.f32.mrb[0].mxu0
      %1168 = vmatprep.mubr.bf16.mxu0 0
      %1169 = vmatmul.mubr.bf16.gmra.mrb[0].mxu0 %v1104
      %v1170 = vpop.f32.mrb[0].mxu0
      %v1171 = vadd.f32 %v1097, %v1170
      %v1172 = vpop.f32.mrb[0].mxu0
      %v1173 = vpop.f32.mrb[0].mxu0
      %v1174 = vadd.f32 %v1097, %v1173
      %v1175 = vpop.f32.mrb[0].mxu0
      %1176 = vmatprep.mubr.bf16.mxu0 0
      %1177 = vmatmul.mubr.bf16.gmra.mrb[0].mxu0 %v1107
      %v1178 = vpop.f32.mrb[0].mxu0
      %v1179 = vadd.f32 %v1097, %v1178
      %v1180 = vpop.f32.mrb[0].mxu0
      %v1181 = vpop.f32.mrb[0].mxu0
      %v1182 = vadd.f32 %v1097, %v1181
      %v1183 = vpop.f32.mrb[0].mxu0
      %1184 = vmatprep.mubr.bf16.mxu0 0
      %1185 = vmatmul.mubr.bf16.gmra.mrb[0].mxu0 %v1110
      %v1186 = vpop.f32.mrb[0].mxu0
      %v1187 = vadd.f32 %v1097, %v1186
      %v1188 = vpop.f32.mrb[0].mxu0
      %v1189 = vpop.f32.mrb[0].mxu0
      %v1190 = vadd.f32 %v1097, %v1189
      %v1191 = vpop.f32.mrb[0].mxu0
      %1192 = vmatprep.mubr.bf16.mxu0 0
      %1193 = vmatmul.mubr.bf16.gmra.mrb[0].mxu0 %v1113
      %v1194 = vpop.f32.mrb[0].mxu0
      %v1195 = vadd.f32 %v1097, %v1194
      %v1196 = vpop.f32.mrb[0].mxu0
      %v1197 = vpop.f32.mrb[0].mxu0
      %v1198 = vadd.f32 %v1097, %v1197
      %v1199 = vpop.f32.mrb[0].mxu0
      %1200 = vmatprep.mubr.bf16.mxu0 0
      %1201 = vmatmul.mubr.bf16.gmra.mrb[0].mxu0 %v1116
      %v1202 = vpop.f32.mrb[0].mxu0
      %v1203 = vadd.f32 %v1097, %v1202
      %v1204 = vpop.f32.mrb[0].mxu0
      %v1205 = vpop.f32.mrb[0].mxu0
      %v1206 = vadd.f32 %v1097, %v1205
      %v1207 = vpop.f32.mrb[0].mxu0
      %1208 = vmatprep.mubr.bf16.mxu0 0
      %1209 = vmatmul.mubr.bf16.gmra.mrb[0].mxu0 %v1119
      %v1210 = vpop.f32.mrb[0].mxu0
      %v1211 = vadd.f32 %v1097, %v1210
      %v1212 = vpop.f32.mrb[0].mxu0
      %v1213 = vpop.f32.mrb[0].mxu0
      %v1214 = vadd.f32 %v1097, %v1213
      %v1215 = vpop.f32.mrb[0].mxu0
      %1216 = vmatprep.mubr.bf16.mxu0 0
      %1217 = vmatmul.mubr.bf16.gmra.mrb[0].mxu0 %v1122
      %v1218 = vpop.f32.mrb[0].mxu0
      %v1219 = vadd.f32 %v1097, %v1218
      %v1220 = vpop.f32.mrb[0].mxu0
      %v1221 = vpop.f32.mrb[0].mxu0
      %v1222 = vadd.f32 %v1097, %v1221
      %v1223 = vpop.f32.mrb[0].mxu0
      %1224 = vdwg.mxu0
      %1225 = vst.msk [vmem:[%s314] sm:$0xff] %vm395, %v1163
      %1226 = vst.msk [vmem:[%s314 + $0x8] sm:$0xff] %vm395, %v1166
      %1227 = vst.msk [vmem:[%s314 + $0x10] sm:$0xff] %vm395, %v1171
      %1228 = vst.msk [vmem:[%s314 + $0x18] sm:$0xff] %vm395, %v1174
      %1229 = vst.msk [vmem:[%s314 + $0x20] sm:$0xff] %vm395, %v1179
      %1230 = vst.msk [vmem:[%s314 + $0x28] sm:$0xff] %vm395, %v1182
      %1231 = vst.msk [vmem:[%s314 + $0x30] sm:$0xff] %vm395, %v1187
      %1232 = vst.msk [vmem:[%s314 + $0x38] sm:$0xff] %vm395, %v1190
      %1233 = vst.msk [vmem:[%s314 + $0x40] sm:$0xff] %vm395, %v1195
      %1234 = vst.msk [vmem:[%s314 + $0x48] sm:$0xff] %vm395, %v1198
      %1235 = vst.msk [vmem:[%s314 + $0x50] sm:$0xff] %vm395, %v1203
      %1236 = vst.msk [vmem:[%s314 + $0x58] sm:$0xff] %vm395, %v1206
      %1237 = vst.msk [vmem:[%s314 + $0x60] sm:$0xff] %vm395, %v1211
      %1238 = vst.msk [vmem:[%s314 + $0x68] sm:$0xff] %vm395, %v1214
      %1239 = vst.msk [vmem:[%s314 + $0x70] sm:$0xff] %vm395, %v1219
      %1240 = vst.msk [vmem:[%s314 + $0x78] sm:$0xff] %vm395, %v1222
      %s1241 = smul.u32 16, %s23
      %p1242 = scmp.lt.s32.totalorder %s22, 1
      %s1243 = scalar_select %p1242, %s22, 1
      %p1244 = scmp.lt.s32.totalorder %s1241, 31
      %s1245 = scalar_select %p1244, %s1241, 31
      %s1246 = smul.addr %s1243, 32
      %s1247 = sadd.s32 %s1245, %s1246
      %s1248 = smul.addr %s1247, 8
      %s1249 = scalar_lea.vmem %s7, %s1248
      // Predicated region
      $region49: #{tpu_custom_call.1} parent=47 // pred_check
        %p1250 = pneg %p204
      $region50: #{tpu_custom_call.1} parent=47 // pred_check_branch
        %1252 = sbr.rel (%p1250) target = $region52
      $region51: #{tpu_custom_call.1} parent=47 // pred_region
        %s1253 = smul.u32 16, %s23
      $region52: #{tpu_custom_call.1} parent=47 // pred_fallthru
        _
    $region48: #{tpu_custom_call.1} parent=5 // pred_fallthru
      _
    %p1254 = scmp.le.s32.totalorder 2, %s13
    // Predicated region
    $region53: #{tpu_custom_call.1} parent=5 // pred_check
      %p1255 = pneg %p1254
    $region54: #{tpu_custom_call.1} parent=5 // pred_check_branch
      %1257 = sbr.rel (%p1255) target = $region56
    $region55: #{tpu_custom_call.1} parent=5 // pred_region
      %s1258 = ssub.s32 %s13, 2
      // Predicated region
      $region57: #{tpu_custom_call.1} parent=55 // pred_check
        %p1259 = pneg %p210
      $region58: #{tpu_custom_call.1} parent=55 // pred_check_branch
        %1261 = sbr.rel (%p1259) target = $region60
      $region59: #{tpu_custom_call.1} parent=55 // pred_region
        %s1262 = smul.u32 16, %s25
        %p1263 = scmp.lt.s32.totalorder %s24, 1
        %s1264 = scalar_select %p1263, %s24, 1
        %p1265 = scmp.lt.s32.totalorder %s1262, 31
        %s1266 = scalar_select %p1265, %s1262, 31
        %s1267 = smul.addr %s1264, 32
        %s1268 = sadd.s32 %s1266, %s1267
        %s1269 = smul.addr %s1268, 8
        %s1270 = scalar_lea.vmem %s7, %s1269
      $region60: #{tpu_custom_call.1} parent=55 // pred_fallthru
        _
    $region56: #{tpu_custom_call.1} parent=5 // pred_fallthru
      _
  $region6: #{tpu_custom_call.1} parent=0 // loop_footer
    %s17 = sadd.s32 1, %s13
  $region7: #{tpu_custom_call.1} parent=0 // loop_footer_branch
    %12 = sbr.rel target = $region3
  $region8: #{tpu_custom_call.1} parent=0 // loop_exit
    _

</llo_original>
